<compile_context>
chip_gen: v6e
topology: v6e:2x2x1
jax: 0.10.0
libtpu: 0.0.40
codegen_flags: <defaults>
</compile_context>

<pallas_src>
import functools

import jax
import jax.numpy as jnp
from jax.experimental import pallas as pl
from jax.experimental.pallas import tpu as pltpu

C = 512          # in_planes // 4 = 2048 // 4
BN_EPS = 1e-5    # nn.BatchNorm1d default eps
NC_PAD = 128     # lane-dense padded class dim


def _head_kernel(feat_ref, gamma_ref, beta_ref, w_ref, out_ref, acc_ref, *, inv_s):
    """One (branch, spatial-chunk) grid step.

    grid = (n_branches, n_spatial_chunks); the spatial axis is the reduction
    axis (last, 'arbitrary').  acc_ref is a per-branch (B, C) f32 running sum
    for the global average pool; BN + classifier run on the final step only.
    """
    s = pl.program_id(1)

    @pl.when(s == 0)
    def _init():
        acc_ref[...] = jnp.zeros_like(acc_ref)

    # Global-average-pool partial sum over this spatial chunk (f32 accumulate).
    acc_ref[...] += jnp.sum(feat_ref[...].astype(jnp.float32), axis=1)

    @pl.when(s == pl.num_programs(1) - 1)
    def _finalize():
        pooled = acc_ref[...] * inv_s                           # (B, C) GAP
        # BatchNorm1d training mode: biased batch stats over the batch dim.
        mu = jnp.mean(pooled, axis=0, keepdims=True)            # (1, C)
        var = jnp.mean((pooled - mu) ** 2, axis=0, keepdims=True)
        feat = ((pooled - mu) * jax.lax.rsqrt(var + BN_EPS)
                * gamma_ref[...] + beta_ref[...])               # (B, C) f32
        # Per-branch classifier on the MXU: (B, C) @ (C, NC_PAD), f32 accum.
        # NC_PAD = 128 keeps the output store a single unmasked lane-dense vst.
        out_ref[...] = jnp.dot(feat.astype(jnp.bfloat16), w_ref[...],
                               preferred_element_type=jnp.float32)


def prepare_classifier_weights(cls_weights):
    """(n_branches, C, NC) -> (n_branches, C, NC_PAD) bf16.

    Done ONCE (model init) — not per forward call.
    """
    nbr, c, nc = cls_weights.shape
    assert nc <= NC_PAD
    w = jnp.pad(cls_weights, ((0, 0), (0, 0), (0, NC_PAD - nc)))
    return w.astype(jnp.bfloat16)


def _pick_s_tile(s, target):
    """Largest multiple-of-8 divisor of s that is <= target (else full s)."""
    if s % 8 != 0 or s <= target:
        return s
    best = 8
    for t in range(8, target + 1, 8):
        if s % t == 0:
            best = t
    return best


def backbone_heads(feats, bn_gamma, bn_beta, cls_w_padded, *, num_classes,
                   s_tile=None, s_tile_target=512):
    """feats: (5, B, S, C) (bf16 preferred, consumed as-is — no extra HBM pass);
    bn_gamma/bn_beta: (5, C); cls_w_padded: (5, C, NC_PAD) bf16 from
    prepare_classifier_weights.  Returns (5, B, num_classes) f32 scores:
    row 0 = cls_score (global), rows 1..4 = cls_1..cls_4."""
    nbr, B, S, Cc = feats.shape
    if s_tile is None:
        s_tile = _pick_s_tile(S, s_tile_target)
    assert S % s_tile == 0, "spatial axis must be divisible by the spatial tile"
    n_s = S // s_tile

    # Tiny per-branch BN params, pre-broadcast-friendly (5, 1, C) f32.
    gamma3 = bn_gamma.astype(jnp.float32).reshape(nbr, 1, Cc)
    beta3 = bn_beta.astype(jnp.float32).reshape(nbr, 1, Cc)

    # VMEM budget (double-buffered inputs/outputs + scratch) + margin.
    feat_block_bytes = B * s_tile * Cc * feats.dtype.itemsize
    w_block_bytes = Cc * NC_PAD * 2
    vmem_bytes = (2 * feat_block_bytes + 2 * w_block_bytes
                  + 2 * 2 * Cc * 4 + 2 * B * NC_PAD * 4 + B * Cc * 4
                  + (2 << 20))
    vmem_limit = int(min(max(vmem_bytes, 4 << 20), 32 << 20))

    flops = (nbr * B * S * Cc                    # GAP adds
             + 2 * nbr * B * Cc * NC_PAD         # classifier matmuls
             + 8 * nbr * B * Cc)                 # BN elementwise
    bytes_accessed = (feats.size * feats.dtype.itemsize
                      + cls_w_padded.size * 2
                      + gamma3.size * 4 + beta3.size * 4
                      + nbr * B * NC_PAD * 4)

    kernel = functools.partial(_head_kernel, inv_s=1.0 / S)

    out = pl.pallas_call(
        kernel,
        out_shape=jax.ShapeDtypeStruct((nbr, B, NC_PAD), jnp.float32),
        grid_spec=pltpu.PrefetchScalarGridSpec(
            num_scalar_prefetch=0,
            grid=(nbr, n_s),                     # (branch, spatial-chunk)
            in_specs=[
                # features: per-branch, per-spatial-chunk block (B, s_tile, C)
                pl.BlockSpec((None, B, s_tile, Cc), lambda n, s: (n, 0, s, 0)),
                # BN gamma / beta: per-branch (1, C)
                pl.BlockSpec((None, 1, Cc), lambda n, s: (n, 0, 0)),
                pl.BlockSpec((None, 1, Cc), lambda n, s: (n, 0, 0)),
                # classifier weights: only this branch's (C, NC_PAD) block
                pl.BlockSpec((None, Cc, NC_PAD), lambda n, s: (n, 0, 0)),
            ],
            out_specs=pl.BlockSpec((None, B, NC_PAD), lambda n, s: (n, 0, 0)),
            scratch_shapes=[pltpu.VMEM((B, Cc), jnp.float32)],   # GAP accumulator
        ),
        compiler_params=pltpu.CompilerParams(
            dimension_semantics=("parallel", "arbitrary"),
            vmem_limit_bytes=vmem_limit,
        ),
        cost_estimate=pl.CostEstimate(
            flops=int(flops),
            transcendentals=int(nbr * Cc),
            bytes_accessed=int(bytes_accessed),
        ),
    )(feats, gamma3, beta3, cls_w_padded)

    return out[..., :num_classes]                # (5, B, NC)


def reference_heads(feats, bn_gamma, bn_beta, cls_weights):
    """Plain-JAX reference of the same math (same bf16 features / f32 BN)."""
    x = feats.astype(jnp.float32)                               # (5, B, S, C)
    pooled = jnp.mean(x, axis=2)                                # (5, B, C)
    mu = jnp.mean(pooled, axis=1, keepdims=True)
    var = jnp.mean((pooled - mu) ** 2, axis=1, keepdims=True)
    feat = ((pooled - mu) * jax.lax.rsqrt(var + BN_EPS)
            * bn_gamma[:, None, :] + bn_beta[:, None, :])
    return jnp.einsum("nbc,nck->nbk",
                      feat.astype(jnp.bfloat16),
                      cls_weights.astype(jnp.bfloat16),
                      preferred_element_type=jnp.float32)


if __name__ == "__main__":
    key = jax.random.PRNGKey(0)
    B, H, W = 2, 8, 8
    S = H * W
    NUM_CLASSES = 8
    N_BRANCHES = 5  # global + 4 parts

    k_feat, k_cls = jax.random.split(key)

    # Synthetic 512-d feature maps standing in for (feat_g, feat_p1..p4),
    # already channels-last (branch, B, S, C) and already bf16 (upstream
    # transformers emit bf16 — no extra wrapper-side cast pass).
    feats = jax.random.normal(
        k_feat, (N_BRANCHES, B, S, C), dtype=jnp.float32).astype(jnp.bfloat16)

    # BatchNorm1d params after weights_init_kaiming: gamma = 1, beta = 0.
    bn_gamma = jnp.ones((N_BRANCHES, C), jnp.float32)
    bn_beta = jnp.zeros((N_BRANCHES, C), jnp.float32)

    # classifier / classifier1..4 after weights_init_classifier:
    # weight ~ N(0, std=0.001), bias=False.  Stored transposed as (C, NC).
    cls_weights = 0.001 * jax.random.normal(
        k_cls, (N_BRANCHES, C, NUM_CLASSES), dtype=jnp.float32)

    # One-time weight prep (would live at model-init time in production).
    cls_w_padded = prepare_classifier_weights(cls_weights)

    # s_tile=16 -> 4 spatial chunks per branch: exercises the accumulator
    # init / finalize paths.  In production use the default (larger) tile.
    out = backbone_heads(feats, bn_gamma, bn_beta, cls_w_padded,
                         num_classes=NUM_CLASSES, s_tile=16)
    out = jax.block_until_ready(out)

    ref = reference_heads(feats, bn_gamma, bn_beta, cls_weights)
    assert out.shape == (N_BRANCHES, B, NUM_CLASSES)
    assert jnp.allclose(out, ref, atol=1e-3, rtol=1e-3), "mismatch vs reference"

    # out[0] == cls_score, out[1..4] == cls_1..cls_4
    print("KERNEL_OK")
</pallas_src>

<mosaic_0001>
module attributes {stable_mosaic.version = 11 : i64} {
  func.func @_head_kernel(%arg0: i32, %arg1: i32, %arg2: memref<1x2x16x512xbf16, #tpu.memory_space<vmem>>, %arg3: memref<1x1x512xf32, #tpu.memory_space<vmem>>, %arg4: memref<1x1x512xf32, #tpu.memory_space<vmem>>, %arg5: memref<1x512x128xbf16, #tpu.memory_space<vmem>>, %arg6: memref<1x2x128xf32, #tpu.memory_space<vmem>>, %arg7: memref<2x512xf32, #tpu.memory_space<vmem>>) attributes {dimension_semantics = [#tpu.dimension_semantics<parallel>, #tpu.dimension_semantics<arbitrary>], iteration_bounds = array<i64: 5, 4>, scalar_prefetch = 0 : i64, scratch_operands = 1 : i64, tpu.core_type = #tpu.core_type<tc>, window_params = [{transform_indices = @transform_0, window_bounds = array<i64: 1, 2, 16, 512>}, {transform_indices = @transform_1, window_bounds = array<i64: 1, 1, 512>}, {transform_indices = @transform_2, window_bounds = array<i64: 1, 1, 512>}, {transform_indices = @transform_3, window_bounds = array<i64: 1, 512, 128>}, {transform_indices = @transform_4, window_bounds = array<i64: 1, 2, 128>}]} {
    %c0_i32 = arith.constant 0 : i32
    %0 = arith.cmpi eq, %arg1, %c0_i32 : i32
    %1 = arith.extui %0 : i1 to i32
    %c0_i32_0 = arith.constant 0 : i32
    %2 = arith.cmpi ne, %1, %c0_i32_0 : i32
    scf.if %2 {
      %cst_9 = arith.constant 0.000000e+00 : f32
      %13 = vector.broadcast %cst_9 : f32 to vector<2x512xf32>
      %c0_10 = arith.constant 0 : index
      %c0_11 = arith.constant 0 : index
      %14 = vector.load %arg7[%c0_10, %c0_11] : memref<2x512xf32, #tpu.memory_space<vmem>>, vector<2x512xf32>
      tpu.vector_store %arg7[%c0_10, %c0_11], %13 {strides = array<i32>} : memref<2x512xf32, #tpu.memory_space<vmem>>, vector<2x512xf32>,
    } else {
    }
    %c0 = arith.constant 0 : index
    %c0_1 = arith.constant 0 : index
    %3 = vector.load %arg7[%c0, %c0_1] : memref<2x512xf32, #tpu.memory_space<vmem>>, vector<2x512xf32>
    %c0_2 = arith.constant 0 : index
    %c0_3 = arith.constant 0 : index
    %c0_4 = arith.constant 0 : index
    %c0_5 = arith.constant 0 : index
    %4 = vector.load %arg2[%c0_2, %c0_3, %c0_4, %c0_5] : memref<1x2x16x512xbf16, #tpu.memory_space<vmem>>, vector<1x2x16x512xbf16>
    %5 = vector.shape_cast %4 : vector<1x2x16x512xbf16> to vector<2x16x512xbf16>
    %6 = arith.extf %5 : vector<2x16x512xbf16> to vector<2x16x512xf32>
    %cst = arith.constant dense<0.000000e+00> : vector<2x512xf32>
    %7 = vector.multi_reduction <add>, %6, %cst [1] : vector<2x16x512xf32> to vector<2x512xf32>
    %8 = arith.addf %3, %7 : vector<2x512xf32>
    %c0_6 = arith.constant 0 : index
    %c0_7 = arith.constant 0 : index
    %9 = vector.load %arg7[%c0_6, %c0_7] : memref<2x512xf32, #tpu.memory_space<vmem>>, vector<2x512xf32>
    tpu.vector_store %arg7[%c0_6, %c0_7], %8 {strides = array<i32>} : memref<2x512xf32, #tpu.memory_space<vmem>>, vector<2x512xf32>,
    %c3_i32 = arith.constant 3 : i32
    %10 = arith.cmpi eq, %arg1, %c3_i32 : i32
    %11 = arith.extui %10 : i1 to i32
    %c0_i32_8 = arith.constant 0 : i32
    %12 = arith.cmpi ne, %11, %c0_i32_8 : i32
    scf.if %12 {
      %c0_9 = arith.constant 0 : index
      %c0_10 = arith.constant 0 : index
      %13 = vector.load %arg7[%c0_9, %c0_10] : memref<2x512xf32, #tpu.memory_space<vmem>>, vector<2x512xf32>
      %cst_11 = arith.constant 1.562500e-02 : f32
      %14 = vector.broadcast %cst_11 : f32 to vector<2x512xf32>
      %15 = arith.mulf %13, %14 : vector<2x512xf32>
      %cst_12 = arith.constant dense<0.000000e+00> : vector<512xf32>
      %16 = vector.multi_reduction <add>, %15, %cst_12 [0] : vector<2x512xf32> to vector<512xf32>
      %17 = vector.shape_cast %16 : vector<512xf32> to vector<1x512xf32>
      %cst_13 = arith.constant 2.000000e+00 : f32
      %18 = vector.broadcast %cst_13 : f32 to vector<1x512xf32>
      %19 = arith.divf %17, %18 : vector<1x512xf32>
      %20 = vector.broadcast %19 : vector<1x512xf32> to vector<2x512xf32>
      %21 = arith.subf %15, %20 : vector<2x512xf32>
      %22 = arith.mulf %21, %21 : vector<2x512xf32>
      %cst_14 = arith.constant dense<0.000000e+00> : vector<512xf32>
      %23 = vector.multi_reduction <add>, %22, %cst_14 [0] : vector<2x512xf32> to vector<512xf32>
      %24 = vector.shape_cast %23 : vector<512xf32> to vector<1x512xf32>
      %cst_15 = arith.constant 2.000000e+00 : f32
      %25 = vector.broadcast %cst_15 : f32 to vector<1x512xf32>
      %26 = arith.divf %24, %25 : vector<1x512xf32>
      %27 = vector.broadcast %19 : vector<1x512xf32> to vector<2x512xf32>
      %28 = arith.subf %15, %27 : vector<2x512xf32>
      %cst_16 = arith.constant 9.99999974E-6 : f32
      %29 = vector.broadcast %cst_16 : f32 to vector<1x512xf32>
      %30 = arith.addf %26, %29 : vector<1x512xf32>
      %31 = math.rsqrt %30 : vector<1x512xf32>
      %32 = vector.broadcast %31 : vector<1x512xf32> to vector<2x512xf32>
      %33 = arith.mulf %28, %32 : vector<2x512xf32>
      %c0_17 = arith.constant 0 : index
      %c0_18 = arith.constant 0 : index
      %c0_19 = arith.constant 0 : index
      %34 = vector.load %arg3[%c0_17, %c0_18, %c0_19] : memref<1x1x512xf32, #tpu.memory_space<vmem>>, vector<1x1x512xf32>
      %35 = vector.shape_cast %34 : vector<1x1x512xf32> to vector<1x512xf32>
      %36 = vector.broadcast %35 : vector<1x512xf32> to vector<2x512xf32>
      %37 = arith.mulf %33, %36 : vector<2x512xf32>
      %c0_20 = arith.constant 0 : index
      %c0_21 = arith.constant 0 : index
      %c0_22 = arith.constant 0 : index
      %38 = vector.load %arg4[%c0_20, %c0_21, %c0_22] : memref<1x1x512xf32, #tpu.memory_space<vmem>>, vector<1x1x512xf32>
      %39 = vector.shape_cast %38 : vector<1x1x512xf32> to vector<1x512xf32>
      %40 = vector.broadcast %39 : vector<1x512xf32> to vector<2x512xf32>
      %41 = arith.addf %37, %40 : vector<2x512xf32>
      %42 = arith.truncf %41 : vector<2x512xf32> to vector<2x512xbf16>
      %c0_23 = arith.constant 0 : index
      %c0_24 = arith.constant 0 : index
      %c0_25 = arith.constant 0 : index
      %43 = vector.load %arg5[%c0_23, %c0_24, %c0_25] : memref<1x512x128xbf16, #tpu.memory_space<vmem>>, vector<1x512x128xbf16>
      %44 = vector.shape_cast %43 : vector<1x512x128xbf16> to vector<512x128xbf16>
      %cst_26 = arith.constant dense<0.000000e+00> : vector<2x128xf32>
      %45 = tpu.matmul %42, %44, %cst_26 {dimension_numbers = #tpu.dot_dimension_numbers<[1], [0], [0], [1], [0, 0, 1, 1], [], []>} : vector<2x512xbf16>, vector<512x128xbf16>, vector<2x128xf32> -> vector<2x128xf32>
      %c0_27 = arith.constant 0 : index
      %c0_28 = arith.constant 0 : index
      %c0_29 = arith.constant 0 : index
      %46 = vector.load %arg6[%c0_27, %c0_28, %c0_29] : memref<1x2x128xf32, #tpu.memory_space<vmem>>, vector<1x2x128xf32>
      %47 = vector.shape_cast %46 : vector<1x2x128xf32> to vector<2x128xf32>
      %48 = vector.shape_cast %45 : vector<2x128xf32> to vector<1x2x128xf32>
      tpu.vector_store %arg6[%c0_27, %c0_28, %c0_29], %48 {strides = array<i32>} : memref<1x2x128xf32, #tpu.memory_space<vmem>>, vector<1x2x128xf32>,
    } else {
    }
    return
  }
  func.func @transform_0(%arg0: i32, %arg1: i32) -> (i32, i32, i32, i32) {
    %c0_i32 = arith.constant 0 : i32
    %c0_i32_0 = arith.constant 0 : i32
    %c0_i32_1 = arith.constant 0 : i32
    return %arg0, %c0_i32, %arg1, %c0_i32_0 : i32, i32, i32, i32
  }
  func.func @transform_1(%arg0: i32, %arg1: i32) -> (i32, i32, i32) {
    %c0_i32 = arith.constant 0 : i32
    %c0_i32_0 = arith.constant 0 : i32
    %c0_i32_1 = arith.constant 0 : i32
    return %arg0, %c0_i32, %c0_i32_0 : i32, i32, i32
  }
  func.func @transform_2(%arg0: i32, %arg1: i32) -> (i32, i32, i32) {
    %c0_i32 = arith.constant 0 : i32
    %c0_i32_0 = arith.constant 0 : i32
    %c0_i32_1 = arith.constant 0 : i32
    return %arg0, %c0_i32, %c0_i32_0 : i32, i32, i32
  }
  func.func @transform_3(%arg0: i32, %arg1: i32) -> (i32, i32, i32) {
    %c0_i32 = arith.constant 0 : i32
    %c0_i32_0 = arith.constant 0 : i32
    %c0_i32_1 = arith.constant 0 : i32
    return %arg0, %c0_i32, %c0_i32_0 : i32, i32, i32
  }
  func.func @transform_4(%arg0: i32, %arg1: i32) -> (i32, i32, i32) {
    %c0_i32 = arith.constant 0 : i32
    %c0_i32_0 = arith.constant 0 : i32
    %c0_i32_1 = arith.constant 0 : i32
    return %arg0, %c0_i32, %c0_i32_0 : i32, i32, i32
  }
}

</mosaic_0001>

<llo_original>
// kernel: tpu_custom_call.1
$region0: #{tpu_custom_call.1}
  #allocation0 [shape = 'u32[]', space=smem, size = 0x4, offset = 0x4, fixed_abs, tag = 'smem constant byte address 0x4 - core index']
  #allocation1 [shape = 'u32[144,128]{1,0:T(1,128)}', space=vmem, size = 0x12000, scoped, tag = 'internal scratch']
  #allocation2 [shape = 'f32[2,512]{1,0:T(2,128)}', space=vmem, size = 0x1000, scoped, tag = 'scratch operand']
  #allocation12 [shape = 's32[]', space=sflag, size = 0x4, offset = 0, fixed_abs, tag = 'sflag constant byte address 0x0 - dummy sync flag']
  %s0 = inlined_call_operand.hbm [shape: bf16[5,2,64,512], index: 0, kind: input, shape index: {}]
  %s1 = inlined_call_operand.hbm [shape: f32[5,1,512], index: 1, kind: input, shape index: {}]
  %s2 = inlined_call_operand.hbm [shape: f32[5,1,512], index: 2, kind: input, shape index: {}]
  %s3 = inlined_call_operand.hbm [shape: bf16[5,512,128], index: 3, kind: input, shape index: {}]
  %s4 = inlined_call_operand.hbm [shape: f32[5,2,128], index: 4, kind: output, shape index: {}]
  %s5 = sld [smem:[#allocation0]]
  $region73: #{tpu_custom_call.1} parent=0
    _
  %s7 = ssub.s32 1, %s5
  %s8 = scalar_select 0, %s7, %s5
  $region1: #{tpu_custom_call.1} parent=0
    #allocation3 [shape = 'u8[65536]{0}', space=vmem, size = 0x10000, scoped, tag = 'input window, operand 0']
    #allocation4 [shape = 's32[2]{0}', space=sflag, size = 0x8, scoped, tag = 'scoped memory for tpu_custom_call.1']
    #allocation5 [shape = 's32[2]{0}', space=sflag, size = 0x8, scoped, tag = 'scoped memory for tpu_custom_call.1']
    #allocation6 [shape = 'u8[4096]{0}', space=vmem, size = 0x1000, scoped, tag = 'input window, operand 1']
    #allocation7 [shape = 's32[2]{0}', space=sflag, size = 0x8, scoped, tag = 'scoped memory for tpu_custom_call.1']
    #allocation8 [shape = 'u8[4096]{0}', space=vmem, size = 0x1000, scoped, tag = 'input window, operand 2']
    #allocation9 [shape = 'u8[262144]{0}', space=vmem, size = 0x40000, scoped, tag = 'input window, operand 3']
    #allocation10 [shape = 's32[2]{0}', space=sflag, size = 0x8, scoped, tag = 'scoped memory for tpu_custom_call.1']
    #allocation11 [shape = 'u8[2048]{0}', space=vmem, size = 0x800, scoped, tag = 'output window, operand 0']
    %9 = vsyncpa [#allocation4], 0
    %s10 = scalar_lea.sflag [#allocation4], 1
    %11 = vsyncpa %s10, 0
    %12 = vsyncpa [#allocation7], 0
    %s13 = scalar_lea.sflag [#allocation7], 1
    %14 = vsyncpa %s13, 0
    %15 = vsyncpa [#allocation10], 0
    %s16 = scalar_lea.sflag [#allocation10], 1
    %17 = vsyncpa %s16, 0
    %18 = vsyncpa [#allocation5], 0
    %s19 = scalar_lea.sflag [#allocation5], 1
    %20 = vsyncpa %s19, 0
    loop: start=0, step=1, limit=22
    $region2: #{tpu_custom_call.1} parent=1 // loop_pre_header
      _
    $region3: #{tpu_custom_call.1} parent=1 // loop_header
      %s22 = sphi 0, %s26
      %p23 = scmp.ge.s32.totalorder %s22, 22
      %s29 = sphi 0, %s41
      %s30 = sphi 0, %s37
      %s31 = sphi 0, %s29
      %s32 = sphi 0, %s30
      %s33 = sphi 0, %s31
      %s34 = sphi 0, %s32
      %s46 = sphi 0, %s48
      %s49 = sphi 0, %s46
      %s50 = sphi 0, %s49
      %s66 = sphi 0, %s50
      %s72 = sphi 0, %s74
      %s75 = sphi 0, %s72
      %s76 = sphi 0, %s75
      %s92 = sphi 0, %s76
      %s98 = sphi 0, %s100
      %s101 = sphi 0, %s98
      %s102 = sphi 0, %s101
      %s118 = sphi 0, %s102
      %s124 = sphi 0, %s126
      %s127 = sphi 0, %s124
      %s128 = sphi 0, %s127
      %s144 = sphi 0, %s128
      %s150 = sphi 0, %s152
      %s153 = sphi 0, %s150
      %s154 = sphi 0, %s153
      %s170 = sphi 0, %s154
    $region4: #{tpu_custom_call.1} parent=1 // loop_header_branch
      %25 = sbr.rel (%p23) target = $region8
    $region5: #{tpu_custom_call.1} parent=1 // loop_body
      %s27 = ssub.s32 %s22, 1
      %s28 = ssub.s32 %s22, 2
      %s35 = sadd.s32 1, %s30
      %p36 = scmp.ge.s32.totalorder %s35, 4
      %s37 = scalar_select %p36, 0, %s35
      %s38 = sadd.s32 1, %s29
      %s39 = scalar_select %p36, %s38, %s29
      %p40 = scmp.ge.s32.totalorder %s39, 5
      %s41 = scalar_select %p40, 0, %s39
      %s42 = ssub.s32 %s29, %s41
      %s43 = ssub.s32 %s30, %s37
      %s44 = sor.u32 %s42, %s43
      %p45 = scmp.eq.s32.totalorder %s44, 0
      %s47 = sadd.s32 %s46, 1
      %s48 = scalar_select %p45, %s46, %s47
      %p51 = pneg %p45
      %p52 = scmp.eq.s32.totalorder %s22, 19
      %p53 = por %p51, %p52
      %p54 = scmp.ne.s32.totalorder %s46, %s49
      %p55 = scmp.eq.s32.totalorder %s22, 0
      %p56 = por %p54, %p55
      %p57 = scmp.ne.s32.totalorder %s46, %s49
      %p58 = scmp.eq.s32.totalorder %s27, 19
      %p59 = por %p57, %p58
      %p60 = scmp.ne.s32.totalorder %s49, %s50
      %p61 = scmp.eq.s32.totalorder %s27, 0
      %p62 = por %p60, %p61
      %p63 = scmp.ne.s32.totalorder %s49, %s50
      %p64 = scmp.eq.s32.totalorder %s28, 19
      %p65 = por %p63, %p64
      %p67 = scmp.ne.s32.totalorder %s50, %s66
      %p68 = scmp.eq.s32.totalorder %s28, 0
      %p69 = por %p67, %p68
      %s70 = ssub.s32 %s29, %s41
      %p71 = scmp.eq.s32.totalorder %s70, 0
      %s73 = sadd.s32 %s72, 1
      %s74 = scalar_select %p71, %s72, %s73
      %p77 = pneg %p71
      %p78 = scmp.eq.s32.totalorder %s22, 19
      %p79 = por %p77, %p78
      %p80 = scmp.ne.s32.totalorder %s72, %s75
      %p81 = scmp.eq.s32.totalorder %s22, 0
      %p82 = por %p80, %p81
      %p83 = scmp.ne.s32.totalorder %s72, %s75
      %p84 = scmp.eq.s32.totalorder %s27, 19
      %p85 = por %p83, %p84
      %p86 = scmp.ne.s32.totalorder %s75, %s76
      %p87 = scmp.eq.s32.totalorder %s27, 0
      %p88 = por %p86, %p87
      %p89 = scmp.ne.s32.totalorder %s75, %s76
      %p90 = scmp.eq.s32.totalorder %s28, 19
      %p91 = por %p89, %p90
      %p93 = scmp.ne.s32.totalorder %s76, %s92
      %p94 = scmp.eq.s32.totalorder %s28, 0
      %p95 = por %p93, %p94
      %s96 = ssub.s32 %s29, %s41
      %p97 = scmp.eq.s32.totalorder %s96, 0
      %s99 = sadd.s32 %s98, 1
      %s100 = scalar_select %p97, %s98, %s99
      %p103 = pneg %p97
      %p104 = scmp.eq.s32.totalorder %s22, 19
      %p105 = por %p103, %p104
      %p106 = scmp.ne.s32.totalorder %s98, %s101
      %p107 = scmp.eq.s32.totalorder %s22, 0
      %p108 = por %p106, %p107
      %p109 = scmp.ne.s32.totalorder %s98, %s101
      %p110 = scmp.eq.s32.totalorder %s27, 19
      %p111 = por %p109, %p110
      %p112 = scmp.ne.s32.totalorder %s101, %s102
      %p113 = scmp.eq.s32.totalorder %s27, 0
      %p114 = por %p112, %p113
      %p115 = scmp.ne.s32.totalorder %s101, %s102
      %p116 = scmp.eq.s32.totalorder %s28, 19
      %p117 = por %p115, %p116
      %p119 = scmp.ne.s32.totalorder %s102, %s118
      %p120 = scmp.eq.s32.totalorder %s28, 0
      %p121 = por %p119, %p120
      %s122 = ssub.s32 %s29, %s41
      %p123 = scmp.eq.s32.totalorder %s122, 0
      %s125 = sadd.s32 %s124, 1
      %s126 = scalar_select %p123, %s124, %s125
      %p129 = pneg %p123
      %p130 = scmp.eq.s32.totalorder %s22, 19
      %p131 = por %p129, %p130
      %p132 = scmp.ne.s32.totalorder %s124, %s127
      %p133 = scmp.eq.s32.totalorder %s22, 0
      %p134 = por %p132, %p133
      %p135 = scmp.ne.s32.totalorder %s124, %s127
      %p136 = scmp.eq.s32.totalorder %s27, 19
      %p137 = por %p135, %p136
      %p138 = scmp.ne.s32.totalorder %s127, %s128
      %p139 = scmp.eq.s32.totalorder %s27, 0
      %p140 = por %p138, %p139
      %p141 = scmp.ne.s32.totalorder %s127, %s128
      %p142 = scmp.eq.s32.totalorder %s28, 19
      %p143 = por %p141, %p142
      %p145 = scmp.ne.s32.totalorder %s128, %s144
      %p146 = scmp.eq.s32.totalorder %s28, 0
      %p147 = por %p145, %p146
      %s148 = ssub.s32 %s29, %s41
      %p149 = scmp.eq.s32.totalorder %s148, 0
      %s151 = sadd.s32 %s150, 1
      %s152 = scalar_select %p149, %s150, %s151
      %p155 = pneg %p149
      %p156 = scmp.eq.s32.totalorder %s22, 19
      %p157 = por %p155, %p156
      %p158 = scmp.ne.s32.totalorder %s150, %s153
      %p159 = scmp.eq.s32.totalorder %s22, 0
      %p160 = por %p158, %p159
      %p161 = scmp.ne.s32.totalorder %s150, %s153
      %p162 = scmp.eq.s32.totalorder %s27, 19
      %p163 = por %p161, %p162
      %p164 = scmp.ne.s32.totalorder %s153, %s154
      %p165 = scmp.eq.s32.totalorder %s27, 0
      %p166 = por %p164, %p165
      %p167 = scmp.ne.s32.totalorder %s153, %s154
      %p168 = scmp.eq.s32.totalorder %s28, 19
      %p169 = por %p167, %p168
      %p171 = scmp.ne.s32.totalorder %s154, %s170
      %p172 = scmp.eq.s32.totalorder %s28, 0
      %p173 = por %p171, %p172
      %p174 = scmp.le.s32.totalorder 1, %s22
      %p175 = scmp.lt.s32.totalorder %s22, 21
      %p176 = pnand %p174, %p175
      %p177 = pneg %p176
      // Predicated region
      $region9: #{tpu_custom_call.1} parent=5 // pred_check
        _
      $region10: #{tpu_custom_call.1} parent=5 // pred_check_branch
        %179 = sbr.rel (%p176) target = $region12
      $region11: #{tpu_custom_call.1} parent=5 // pred_region
        %s180 = ssub.s32 %s22, 1
      $region12: #{tpu_custom_call.1} parent=5 // pred_fallthru
        _
      %p181 = scmp.lt.s32.totalorder %s22, 20
      // Predicated region
      $region13: #{tpu_custom_call.1} parent=5 // pred_check
        %p182 = pneg %p181
      $region14: #{tpu_custom_call.1} parent=5 // pred_check_branch
        %184 = sbr.rel (%p182) target = $region16
      $region15: #{tpu_custom_call.1} parent=5 // pred_region
        // Predicated region
        $region17: #{tpu_custom_call.1} parent=15 // pred_check
          %p185 = pneg %p56
        $region18: #{tpu_custom_call.1} parent=15 // pred_check_branch
          %187 = sbr.rel (%p185) target = $region20
        $region19: #{tpu_custom_call.1} parent=15 // pred_region
          #allocation13 [shape = 'u32[6]{0}', space=smem, size = 0x18, scoped, tag = 'DMA stride descriptor']
          %s188 = sand.u32 %s46, 1
          %s189 = scalar_lea.sflag [#allocation4], %s188
          %s190 = sand.u32 %s46, 1
          %s191 = smul.addr %s190, 64
          %s192 = scalar_lea.vmem [#allocation3], %s191
          %s193 = smul.u32 2, %s30
          %s195 = ssub.s32 1024, 1024
          %196 = vsyncadd %s189, %s195
          %s197 = smul.addr %s193, 4
          %s198 = smul.addr %s29, 64
          %s199 = sadd.s32 %s197, %s198
          %s200 = smul.addr %s199, 64
          %s201 = scalar_lea.hbm %s0, %s200
          %s203 = sshll.u32 1, 14
          %s204 = sxor.u32 4294967295, %s203
          %s206 = sld [smem:[#allocation0]]
          %s207 = sadd.s32 2, %s206
          %s209 = sshll.u32 7, 26
          %s210 = sxor.u32 4294967295, %s209
          %s211 = sand.u32 0, %s210
          %s212 = sshll.u32 %s207, 26
          %s213 = sor.u32 %s211, %s212
          %s214 = sshll.u32 %s192, 4
          %s215 = int_to_ptr.vmem [resolvable:$true] %s214
          %221 = sst [smem:[#allocation13]] 2048
          %s222 = scalar_lea.smem [#allocation13], 1
          %223 = sst [smem:[%s222]] 512
          %s224 = scalar_lea.smem [#allocation13], 2
          %225 = sst [smem:[%s224]] 2
          %s226 = scalar_lea.smem [#allocation13], 3
          %227 = sst [smem:[%s226]] 256
          %s228 = scalar_lea.smem [#allocation13], 4
          %229 = sst [smem:[%s228]] 256
          %s230 = scalar_lea.smem [#allocation13], 5
          %231 = sst [smem:[%s230]] 16
          %233 = dma.general %s201, 1024, %s215, %s189, 131072, [#allocation13], %s213, 0
        $region20: #{tpu_custom_call.1} parent=15 // pred_fallthru
          _
        // Predicated region
        $region21: #{tpu_custom_call.1} parent=15 // pred_check
          %p234 = pneg %p82
        $region22: #{tpu_custom_call.1} parent=15 // pred_check_branch
          %236 = sbr.rel (%p234) target = $region24
        $region23: #{tpu_custom_call.1} parent=15 // pred_region
          %s237 = sand.u32 %s22, 1
          %s238 = scalar_lea.sflag [#allocation7], %s237
          %s239 = sand.u32 %s72, 1
          %s240 = smul.addr %s239, 4
          %s241 = scalar_lea.vmem [#allocation6], %s240
          %s243 = ssub.s32 64, 64
          %244 = vsyncadd %s238, %s243
          %s245 = smul.addr %s29, 4
          %s246 = smul.addr %s245, 16
          %s247 = scalar_lea.hbm %s1, %s246
          %s249 = sshll.u32 %s241, 4
          %s250 = int_to_ptr.vmem [resolvable:$true] %s249
          %252 = dma.hbm_to_vmem [thread:$0]  %s247, 64, %s250, %s238
        $region24: #{tpu_custom_call.1} parent=15 // pred_fallthru
          _
        // Predicated region
        $region25: #{tpu_custom_call.1} parent=15 // pred_check
          %p253 = pneg %p108
        $region26: #{tpu_custom_call.1} parent=15 // pred_check_branch
          %255 = sbr.rel (%p253) target = $region28
        $region27: #{tpu_custom_call.1} parent=15 // pred_region
          %s256 = sand.u32 %s22, 1
          %s257 = scalar_lea.sflag [#allocation7], %s256
          %s258 = sand.u32 %s98, 1
          %s259 = smul.addr %s258, 4
          %s260 = scalar_lea.vmem [#allocation8], %s259
          %s262 = ssub.s32 64, 64
          %263 = vsyncadd %s257, %s262
          %s264 = smul.addr %s29, 4
          %s265 = smul.addr %s264, 16
          %s266 = scalar_lea.hbm %s2, %s265
          %s268 = sshll.u32 %s260, 4
          %s269 = int_to_ptr.vmem [resolvable:$true] %s268
          %271 = dma.hbm_to_vmem [thread:$0]  %s266, 64, %s269, %s257
        $region28: #{tpu_custom_call.1} parent=15 // pred_fallthru
          _
        // Predicated region
        $region29: #{tpu_custom_call.1} parent=15 // pred_check
          %p272 = pneg %p134
        $region30: #{tpu_custom_call.1} parent=15 // pred_check_branch
          %274 = sbr.rel (%p272) target = $region32
        $region31: #{tpu_custom_call.1} parent=15 // pred_region
          %s275 = sand.u32 %s124, 1
          %s276 = scalar_lea.sflag [#allocation10], %s275
          %s277 = sand.u32 %s124, 1
          %s278 = smul.addr %s277, 256
          %s279 = scalar_lea.vmem [#allocation9], %s278
          %s281 = ssub.s32 4096, 4096
          %282 = vsyncadd %s276, %s281
          %s283 = smul.addr %s29, 64
          %s284 = smul.addr %s283, 64
          %s285 = scalar_lea.hbm %s3, %s284
          %s286 = sshll.u32 %s279, 4
          %s287 = int_to_ptr.vmem [resolvable:$true] %s286
          %292 = dma.hbm_to_vmem [thread:$0]  %s285, 4096, %s287, %s276, 64, 64, 4
        $region32: #{tpu_custom_call.1} parent=15 // pred_fallthru
          _
      $region16: #{tpu_custom_call.1} parent=5 // pred_fallthru
        _
      %p293 = scmp.le.s32.totalorder 1, %s22
      %p294 = scmp.lt.s32.totalorder %s22, 21
      %p295 = pnand %p293, %p294
      %p296 = pneg %p295
      // Predicated region
      $region33: #{tpu_custom_call.1} parent=5 // pred_check
        _
      $region34: #{tpu_custom_call.1} parent=5 // pred_check_branch
        %298 = sbr.rel (%p295) target = $region36
      $region35: #{tpu_custom_call.1} parent=5 // pred_region
        %s299 = ssub.s32 %s22, 1
        %s300 = sand.u32 %s49, 1
        %s301 = scalar_lea.sflag [#allocation4], %s300
        %s302 = sand.u32 %s49, 1
        %s303 = smul.addr %s302, 64
        %s304 = scalar_lea.vmem [#allocation3], %s303
        // Predicated region
        $region37: #{tpu_custom_call.1} parent=35 // pred_check
          %p305 = pneg %p62
        $region38: #{tpu_custom_call.1} parent=35 // pred_check_branch
          %307 = sbr.rel (%p305) target = $region40
        $region39: #{tpu_custom_call.1} parent=35 // pred_region
          %308 = dma.done %s301, 1024
        $region40: #{tpu_custom_call.1} parent=35 // pred_fallthru
          _
        %s309 = sand.u32 %s27, 1
        %s310 = scalar_lea.sflag [#allocation7], %s309
        %s311 = sand.u32 %s75, 1
        %s312 = smul.addr %s311, 4
        %s313 = scalar_lea.vmem [#allocation6], %s312
        // Predicated region
        $region41: #{tpu_custom_call.1} parent=35 // pred_check
          %p314 = pneg %p88
        $region42: #{tpu_custom_call.1} parent=35 // pred_check_branch
          %316 = sbr.rel (%p314) target = $region44
        $region43: #{tpu_custom_call.1} parent=35 // pred_region
          %317 = dma.done %s310, 64
        $region44: #{tpu_custom_call.1} parent=35 // pred_fallthru
          _
        %s318 = sand.u32 %s27, 1
        %s319 = scalar_lea.sflag [#allocation7], %s318
        %s320 = sand.u32 %s101, 1
        %s321 = smul.addr %s320, 4
        %s322 = scalar_lea.vmem [#allocation8], %s321
        // Predicated region
        $region45: #{tpu_custom_call.1} parent=35 // pred_check
          %p323 = pneg %p114
        $region46: #{tpu_custom_call.1} parent=35 // pred_check_branch
          %325 = sbr.rel (%p323) target = $region48
        $region47: #{tpu_custom_call.1} parent=35 // pred_region
          %326 = dma.done %s319, 64
        $region48: #{tpu_custom_call.1} parent=35 // pred_fallthru
          _
        %s327 = sand.u32 %s127, 1
        %s328 = scalar_lea.sflag [#allocation10], %s327
        %s329 = sand.u32 %s127, 1
        %s330 = smul.addr %s329, 256
        %s331 = scalar_lea.vmem [#allocation9], %s330
        // Predicated region
        $region49: #{tpu_custom_call.1} parent=35 // pred_check
          %p332 = pneg %p140
        $region50: #{tpu_custom_call.1} parent=35 // pred_check_branch
          %334 = sbr.rel (%p332) target = $region52
        $region51: #{tpu_custom_call.1} parent=35 // pred_region
          %335 = dma.done %s328, 4096
        $region52: #{tpu_custom_call.1} parent=35 // pred_fallthru
          _
        %s336 = sand.u32 %s49, 1
        %s337 = scalar_lea.sflag [#allocation4], %s336
        %s338 = sand.u32 %s49, 1
        %s339 = smul.addr %s338, 64
        %s340 = scalar_lea.vmem [#allocation3], %s339
        %p341 = pneg %p62
        %p342 = pneg %p59
        %s343 = sand.u32 %s27, 1
        %s344 = scalar_lea.sflag [#allocation7], %s343
        %s345 = sand.u32 %s75, 1
        %s346 = smul.addr %s345, 4
        %s347 = scalar_lea.vmem [#allocation6], %s346
        %p348 = pneg %p88
        %p349 = pneg %p85
        %s350 = sand.u32 %s27, 1
        %s351 = scalar_lea.sflag [#allocation7], %s350
        %s352 = sand.u32 %s101, 1
        %s353 = smul.addr %s352, 4
        %s354 = scalar_lea.vmem [#allocation8], %s353
        %p355 = pneg %p114
        %p356 = pneg %p111
        %s357 = sand.u32 %s127, 1
        %s358 = scalar_lea.sflag [#allocation10], %s357
        %s359 = sand.u32 %s127, 1
        %s360 = smul.addr %s359, 256
        %s361 = scalar_lea.vmem [#allocation9], %s360
        %p362 = pneg %p140
        %p363 = pneg %p137
        %p364 = pneg %p166
        %p365 = pneg %p163
        %s366 = sand.u32 %s153, 1
        %s367 = scalar_lea.sflag [#allocation5], %s366
        %s368 = sand.u32 %s153, 1
        %s369 = smul.addr %s368, 2
        %s370 = scalar_lea.vmem [#allocation11], %s369
        %s371 = smul.u32 2, %s32
        %p373 = scmp.eq.s32.totalorder %s32, 0
        // Predicated region
        $region53: #{tpu_custom_call.1} parent=35 // pred_check
          %p374 = pneg %p373
        $region54: #{tpu_custom_call.1} parent=35 // pred_check_branch
          %376 = sbr.rel (%p374) target = $region56
        $region55: #{tpu_custom_call.1} parent=35 // pred_region
          %377 = vst [vmem:[#allocation2] sm:$0xff] 0.0
        $region56: #{tpu_custom_call.1} parent=35 // pred_fallthru
          _
        %v378 = vld [vmem:[#allocation2] sm:$0xff]
        %v379 = vld [vmem:[%s304] sm:$0xff]
        %v380 = vld [vmem:[%s304 + $0x8] sm:$0xff]
        %v381 = vld [vmem:[%s304 + $0x10] sm:$0xff]
        %v382 = vld [vmem:[%s304 + $0x18] sm:$0xff]
        %v383 = vld [vmem:[%s304 + $0x20] sm:$0xff]
        %v384 = vld [vmem:[%s304 + $0x28] sm:$0xff]
        %v385 = vld [vmem:[%s304 + $0x30] sm:$0xff]
        %v386 = vld [vmem:[%s304 + $0x38] sm:$0xff]
        %v387 = vunpack.c.l.bf16 %v379
        %v388 = vunpack.c.h.bf16 %v379
        %v389 = vunpack.c.l.bf16 %v380
        %v390 = vunpack.c.h.bf16 %v380
        %v391 = vunpack.c.l.bf16 %v381
        %v392 = vunpack.c.h.bf16 %v381
        %v393 = vunpack.c.l.bf16 %v382
        %v394 = vunpack.c.h.bf16 %v382
        %v395 = vunpack.c.l.bf16 %v383
        %v396 = vunpack.c.h.bf16 %v383
        %v397 = vunpack.c.l.bf16 %v384
        %v398 = vunpack.c.h.bf16 %v384
        %v399 = vunpack.c.l.bf16 %v385
        %v400 = vunpack.c.h.bf16 %v385
        %v401 = vunpack.c.l.bf16 %v386
        %v402 = vunpack.c.h.bf16 %v386
        %v403 = vadd.f32 %v387, %v391
        %v404 = vrot.slane %v403, 4
        %v405 = vadd.f32 %v403, %v404
        %v406 = vrot.slane %v405, 2
        %v407 = vadd.f32 %v405, %v406
        %v408 = vrot.slane %v407, 1
        %v409 = vadd.f32 %v407, %v408
        %v410 = vadd.f32 %v388, %v392
        %v411 = vrot.slane %v410, 4
        %v412 = vadd.f32 %v410, %v411
        %v413 = vrot.slane %v412, 2
        %v414 = vadd.f32 %v412, %v413
        %v415 = vrot.slane %v414, 1
        %v416 = vadd.f32 %v414, %v415
        %v417 = vadd.f32 %v389, %v393
        %v418 = vrot.slane %v417, 4
        %v419 = vadd.f32 %v417, %v418
        %v420 = vrot.slane %v419, 2
        %v421 = vadd.f32 %v419, %v420
        %v422 = vrot.slane %v421, 1
        %v423 = vadd.f32 %v421, %v422
        %v424 = vadd.f32 %v390, %v394
        %v425 = vrot.slane %v424, 4
        %v426 = vadd.f32 %v424, %v425
        %v427 = vrot.slane %v426, 2
        %v428 = vadd.f32 %v426, %v427
        %v429 = vrot.slane %v428, 1
        %v430 = vadd.f32 %v428, %v429
        %v431 = vadd.f32 %v395, %v399
        %v432 = vrot.slane %v431, 4
        %v433 = vadd.f32 %v431, %v432
        %v434 = vrot.slane %v433, 2
        %v435 = vadd.f32 %v433, %v434
        %v436 = vrot.slane %v435, 1
        %v437 = vadd.f32 %v435, %v436
        %v438 = vadd.f32 %v396, %v400
        %v439 = vrot.slane %v438, 4
        %v440 = vadd.f32 %v438, %v439
        %v441 = vrot.slane %v440, 2
        %v442 = vadd.f32 %v440, %v441
        %v443 = vrot.slane %v442, 1
        %v444 = vadd.f32 %v442, %v443
        %v445 = vadd.f32 %v397, %v401
        %v446 = vrot.slane %v445, 4
        %v447 = vadd.f32 %v445, %v446
        %v448 = vrot.slane %v447, 2
        %v449 = vadd.f32 %v447, %v448
        %v450 = vrot.slane %v449, 1
        %v451 = vadd.f32 %v449, %v450
        %v452 = vadd.f32 %v398, %v402
        %v453 = vrot.slane %v452, 4
        %v454 = vadd.f32 %v452, %v453
        %v455 = vrot.slane %v454, 2
        %v456 = vadd.f32 %v454, %v455
        %v457 = vrot.slane %v456, 1
        %v458 = vadd.f32 %v456, %v457
        %v467 = vcombine.low %v409, %v416
        %v468 = vcombine.low %v423, %v430
        %v470 = vunpack.c.l.s4 1983009808
        %v471 = vunpack.c.0.s8 %v470
        %v472 = vlaneseq
        %v473 = vshrl.u32 %v472, 7
        %v474 = vsub.s32 %v471, %v473
        %v475 = vrot.slane %v467, %v474
        %v477 = vunpack.c.l.s4 1983009808
        %v478 = vunpack.c.0.s8 %v477
        %v479 = vlaneseq
        %v480 = vshrl.u32 %v479, 7
        %v481 = vsub.s32 %v478, %v480
        %v482 = vrot.slane %v468, %v481
        %v483 = vcombine.low %v475, %v482
        %v484 = vcombine.low %v437, %v444
        %v485 = vcombine.low %v451, %v458
        %v487 = vunpack.c.l.s4 1983009808
        %v488 = vunpack.c.0.s8 %v487
        %v489 = vlaneseq
        %v490 = vshrl.u32 %v489, 7
        %v491 = vsub.s32 %v488, %v490
        %v492 = vrot.slane %v484, %v491
        %v494 = vunpack.c.l.s4 1983009808
        %v495 = vunpack.c.0.s8 %v494
        %v496 = vlaneseq
        %v497 = vshrl.u32 %v496, 7
        %v498 = vsub.s32 %v495, %v497
        %v499 = vrot.slane %v485, %v498
        %v500 = vcombine.low %v492, %v499
        %vm501 = vcmask 1044484
        %v502 = vsel %vm501, %v483, %v483
        %vm503 = vcmask 1046534
        %v504 = vsel %vm503, %v483, %v502
        %v505 = vrot.slane %v500, 7
        %vm506 = vcmask 1041409
        %v507 = vsel %vm506, %v505, %v504
        %vm508 = vcmask 1043459
        %v509 = vsel %vm508, %v505, %v507
        %vm510 = vcmask 1045509
        %v511 = vsel %vm510, %v505, %v509
        %vm512 = vcmask 1047559
        %v513 = vsel %vm512, %v505, %v511
        %v515 = vadd.f32 %v378, %v513
        %516 = vst [vmem:[#allocation2] sm:$0xff] %v515
        %p517 = scmp.eq.s32.totalorder %s32, 3
        // Predicated region
        $region57: #{tpu_custom_call.1} parent=35 // pred_check
          %p518 = pneg %p517
        $region58: #{tpu_custom_call.1} parent=35 // pred_check_branch
          %520 = sbr.rel (%p518) target = $region60
        $region59: #{tpu_custom_call.1} parent=35 // pred_region
          %v521 = vld [vmem:[#allocation2] sm:$0xff]
          %v522 = vmul.f32 %v521, 0.015625
          %v524 = vcombine.high %v522, %v522
          %v526 = vunpack.c.l.s4 1983009808
          %v527 = vunpack.c.0.s8 %v526
          %v528 = vlaneseq
          %v529 = vshrl.u32 %v528, 7
          %v530 = vsub.s32 %v527, %v529
          %v531 = vrot.slane %v522, %v530
          %v533 = vunpack.c.l.s4 1983009808
          %v534 = vunpack.c.0.s8 %v533
          %v535 = vlaneseq
          %v536 = vshrl.u32 %v535, 7
          %v537 = vsub.s32 %v534, %v536
          %v538 = vrot.slane %v524, %v537
          %v539 = vcombine.high %v531, %v531
          %v540 = vcombine.high %v538, %v538
          %vm545 = vcmask 1041408
          %v546 = vsel %vm545, %v531, 0.0
          %v547 = vrot.slane %v546, 4
          %v548 = vadd.f32 %v546, %v547
          %v549 = vrot.slane %v548, 2
          %v550 = vadd.f32 %v548, %v549
          %v551 = vrot.slane %v550, 1
          %v552 = vadd.f32 %v550, %v551
          %v553 = vsel %vm545, %v539, 0.0
          %v554 = vrot.slane %v553, 4
          %v555 = vadd.f32 %v553, %v554
          %v556 = vrot.slane %v555, 2
          %v557 = vadd.f32 %v555, %v556
          %v558 = vrot.slane %v557, 1
          %v559 = vadd.f32 %v557, %v558
          %v560 = vsel %vm545, %v538, 0.0
          %v561 = vrot.slane %v560, 4
          %v562 = vadd.f32 %v560, %v561
          %v563 = vrot.slane %v562, 2
          %v564 = vadd.f32 %v562, %v563
          %v565 = vrot.slane %v564, 1
          %v566 = vadd.f32 %v564, %v565
          %v567 = vsel %vm545, %v540, 0.0
          %v568 = vrot.slane %v567, 4
          %v569 = vadd.f32 %v567, %v568
          %v570 = vrot.slane %v569, 2
          %v571 = vadd.f32 %v569, %v570
          %v572 = vrot.slane %v571, 1
          %v573 = vadd.f32 %v571, %v572
          %v574 = vrcp.pop 2.0
          %v575 = vmul.f32 %v552, %v574
          %v576 = vmul.f32 %v559, %v574
          %v577 = vmul.f32 %v566, %v574
          %v578 = vmul.f32 %v573, %v574
          %v583 = vcombine.low %v575, %v576
          %v584 = vcombine.low %v577, %v578
          %v586 = vunpack.c.l.s4 1983009808
          %v587 = vunpack.c.0.s8 %v586
          %v588 = vlaneseq
          %v589 = vshrl.u32 %v588, 7
          %v590 = vsub.s32 %v587, %v589
          %v591 = vrot.slane %v583, %v590
          %v593 = vunpack.c.l.s4 1983009808
          %v594 = vunpack.c.0.s8 %v593
          %v595 = vlaneseq
          %v596 = vshrl.u32 %v595, 7
          %v597 = vsub.s32 %v594, %v596
          %v598 = vrot.slane %v584, %v597
          %v599 = vcombine.low %v591, %v598
          %v601 = vsub.f32 %v522, %v599
          %v602 = vmul.f32 %v601, %v601
          %v604 = vcombine.high %v602, %v602
          %v606 = vunpack.c.l.s4 1983009808
          %v607 = vunpack.c.0.s8 %v606
          %v608 = vlaneseq
          %v609 = vshrl.u32 %v608, 7
          %v610 = vsub.s32 %v607, %v609
          %v611 = vrot.slane %v602, %v610
          %v613 = vunpack.c.l.s4 1983009808
          %v614 = vunpack.c.0.s8 %v613
          %v615 = vlaneseq
          %v616 = vshrl.u32 %v615, 7
          %v617 = vsub.s32 %v614, %v616
          %v618 = vrot.slane %v604, %v617
          %v619 = vcombine.high %v611, %v611
          %v620 = vcombine.high %v618, %v618
          %v625 = vsel %vm545, %v611, 0.0
          %v626 = vrot.slane %v625, 4
          %v627 = vadd.f32 %v625, %v626
          %v628 = vrot.slane %v627, 2
          %v629 = vadd.f32 %v627, %v628
          %v630 = vrot.slane %v629, 1
          %v631 = vadd.f32 %v629, %v630
          %v632 = vsel %vm545, %v619, 0.0
          %v633 = vrot.slane %v632, 4
          %v634 = vadd.f32 %v632, %v633
          %v635 = vrot.slane %v634, 2
          %v636 = vadd.f32 %v634, %v635
          %v637 = vrot.slane %v636, 1
          %v638 = vadd.f32 %v636, %v637
          %v639 = vsel %vm545, %v618, 0.0
          %v640 = vrot.slane %v639, 4
          %v641 = vadd.f32 %v639, %v640
          %v642 = vrot.slane %v641, 2
          %v643 = vadd.f32 %v641, %v642
          %v644 = vrot.slane %v643, 1
          %v645 = vadd.f32 %v643, %v644
          %v646 = vsel %vm545, %v620, 0.0
          %v647 = vrot.slane %v646, 4
          %v648 = vadd.f32 %v646, %v647
          %v649 = vrot.slane %v648, 2
          %v650 = vadd.f32 %v648, %v649
          %v651 = vrot.slane %v650, 1
          %v652 = vadd.f32 %v650, %v651
          %v653 = vmul.f32 %v631, %v574
          %v654 = vmul.f32 %v638, %v574
          %v655 = vmul.f32 %v645, %v574
          %v656 = vmul.f32 %v652, %v574
          %v657 = vadd.f32 %v653, 1e-05
          %v658 = vadd.f32 %v654, 1e-05
          %v659 = vadd.f32 %v655, 1e-05
          %v660 = vadd.f32 %v656, 1e-05
          %v661 = vrsqrt.pop %v657
          %v662 = vrsqrt.pop %v658
          %v663 = vrsqrt.pop %v659
          %v664 = vrsqrt.pop %v660
          %v669 = vcombine.low %v661, %v662
          %v670 = vcombine.low %v663, %v664
          %v672 = vunpack.c.l.s4 1983009808
          %v673 = vunpack.c.0.s8 %v672
          %v674 = vlaneseq
          %v675 = vshrl.u32 %v674, 7
          %v676 = vsub.s32 %v673, %v675
          %v677 = vrot.slane %v669, %v676
          %v679 = vunpack.c.l.s4 1983009808
          %v680 = vunpack.c.0.s8 %v679
          %v681 = vlaneseq
          %v682 = vshrl.u32 %v681, 7
          %v683 = vsub.s32 %v680, %v682
          %v684 = vrot.slane %v670, %v683
          %v685 = vcombine.low %v677, %v684
          %v687 = vmul.f32 %v601, %v685
          %v688 = vld [vmem:[%s313] sm:$0xf]
          %v690 = vlaneseq
          %v691 = vshrl.u32 %v690, 7
          %v692 = vsub.s32 0, %v691
          %v693 = vrot.slane %v688, %v692
          %v694 = vlaneseq
          %v695 = vshrl.u32 %v694, 7
          %v696 = vsub.s32 1, %v695
          %v697 = vrot.slane %v688, %v696
          %v698 = vlaneseq
          %v699 = vshrl.u32 %v698, 7
          %v700 = vsub.s32 2, %v699
          %v701 = vrot.slane %v688, %v700
          %v702 = vlaneseq
          %v703 = vshrl.u32 %v702, 7
          %v704 = vsub.s32 3, %v703
          %v705 = vrot.slane %v688, %v704
          %v706 = vcombine.low %v693, %v697
          %v707 = vcombine.low %v701, %v705
          %v709 = vunpack.c.l.s4 1983009808
          %v710 = vunpack.c.0.s8 %v709
          %v711 = vlaneseq
          %v712 = vshrl.u32 %v711, 7
          %v713 = vsub.s32 %v710, %v712
          %v714 = vrot.slane %v706, %v713
          %v716 = vunpack.c.l.s4 1983009808
          %v717 = vunpack.c.0.s8 %v716
          %v718 = vlaneseq
          %v719 = vshrl.u32 %v718, 7
          %v720 = vsub.s32 %v717, %v719
          %v721 = vrot.slane %v707, %v720
          %v722 = vcombine.low %v714, %v721
          %v724 = vmul.f32 %v687, %v722
          %v725 = vld [vmem:[%s322] sm:$0xf]
          %v727 = vlaneseq
          %v728 = vshrl.u32 %v727, 7
          %v729 = vsub.s32 0, %v728
          %v730 = vrot.slane %v725, %v729
          %v731 = vlaneseq
          %v732 = vshrl.u32 %v731, 7
          %v733 = vsub.s32 1, %v732
          %v734 = vrot.slane %v725, %v733
          %v735 = vlaneseq
          %v736 = vshrl.u32 %v735, 7
          %v737 = vsub.s32 2, %v736
          %v738 = vrot.slane %v725, %v737
          %v739 = vlaneseq
          %v740 = vshrl.u32 %v739, 7
          %v741 = vsub.s32 3, %v740
          %v742 = vrot.slane %v725, %v741
          %v743 = vcombine.low %v730, %v734
          %v744 = vcombine.low %v738, %v742
          %v746 = vunpack.c.l.s4 1983009808
          %v747 = vunpack.c.0.s8 %v746
          %v748 = vlaneseq
          %v749 = vshrl.u32 %v748, 7
          %v750 = vsub.s32 %v747, %v749
          %v751 = vrot.slane %v743, %v750
          %v753 = vunpack.c.l.s4 1983009808
          %v754 = vunpack.c.0.s8 %v753
          %v755 = vlaneseq
          %v756 = vshrl.u32 %v755, 7
          %v757 = vsub.s32 %v754, %v756
          %v758 = vrot.slane %v744, %v757
          %v759 = vcombine.low %v751, %v758
          %v761 = vadd.f32 %v724, %v759
          %v763 = vcombine.high %v761, %v761
          %v765 = vunpack.c.l.s4 1983009808
          %v766 = vunpack.c.0.s8 %v765
          %v767 = vlaneseq
          %v768 = vshrl.u32 %v767, 7
          %v769 = vsub.s32 %v766, %v768
          %v770 = vrot.slane %v761, %v769
          %v772 = vunpack.c.l.s4 1983009808
          %v773 = vunpack.c.0.s8 %v772
          %v774 = vlaneseq
          %v775 = vshrl.u32 %v774, 7
          %v776 = vsub.s32 %v773, %v775
          %v777 = vrot.slane %v763, %v776
          %v778 = vcombine.high %v770, %v770
          %v779 = vcombine.high %v777, %v777
          %v784 = vpack.c.bf16 %v770, %v770
          %v785 = vpack.c.bf16 %v778, %v778
          %v786 = vpack.c.bf16 %v777, %v777
          %v787 = vpack.c.bf16 %v779, %v779
          %v788 = vld [vmem:[%s331] sm:$0xf]
          %v789 = vld [vmem:[%s331 + $0x4] sm:$0xf]
          %v790 = vld [vmem:[%s331 + $0x8] sm:$0xf]
          %v791 = vld [vmem:[%s331 + $0xc] sm:$0xf]
          %v792 = vld [vmem:[%s331 + $0x10] sm:$0xf]
          %v793 = vld [vmem:[%s331 + $0x14] sm:$0xf]
          %v794 = vld [vmem:[%s331 + $0x18] sm:$0xf]
          %v795 = vld [vmem:[%s331 + $0x1c] sm:$0xf]
          %v796 = vld [vmem:[%s331 + $0x20] sm:$0xf]
          %v797 = vld [vmem:[%s331 + $0x24] sm:$0xf]
          %v798 = vld [vmem:[%s331 + $0x28] sm:$0xf]
          %v799 = vld [vmem:[%s331 + $0x2c] sm:$0xf]
          %v800 = vld [vmem:[%s331 + $0x30] sm:$0xf]
          %v801 = vld [vmem:[%s331 + $0x34] sm:$0xf]
          %v802 = vld [vmem:[%s331 + $0x38] sm:$0xf]
          %v803 = vld [vmem:[%s331 + $0x3c] sm:$0xf]
          %v804 = vld [vmem:[%s331 + $0x40] sm:$0xf]
          %v805 = vld [vmem:[%s331 + $0x44] sm:$0xf]
          %v806 = vld [vmem:[%s331 + $0x48] sm:$0xf]
          %v807 = vld [vmem:[%s331 + $0x4c] sm:$0xf]
          %v808 = vld [vmem:[%s331 + $0x50] sm:$0xf]
          %v809 = vld [vmem:[%s331 + $0x54] sm:$0xf]
          %v810 = vld [vmem:[%s331 + $0x58] sm:$0xf]
          %v811 = vld [vmem:[%s331 + $0x5c] sm:$0xf]
          %v812 = vld [vmem:[%s331 + $0x60] sm:$0xf]
          %v813 = vld [vmem:[%s331 + $0x64] sm:$0xf]
          %v814 = vld [vmem:[%s331 + $0x68] sm:$0xf]
          %v815 = vld [vmem:[%s331 + $0x6c] sm:$0xf]
          %v816 = vld [vmem:[%s331 + $0x70] sm:$0xf]
          %v817 = vld [vmem:[%s331 + $0x74] sm:$0xf]
          %v818 = vld [vmem:[%s331 + $0x78] sm:$0xf]
          %v819 = vld [vmem:[%s331 + $0x7c] sm:$0xf]
          %v820 = vld [vmem:[%s331 + $0x80] sm:$0xf]
          %v821 = vld [vmem:[%s331 + $0x84] sm:$0xf]
          %v822 = vld [vmem:[%s331 + $0x88] sm:$0xf]
          %v823 = vld [vmem:[%s331 + $0x8c] sm:$0xf]
          %v824 = vld [vmem:[%s331 + $0x90] sm:$0xf]
          %v825 = vld [vmem:[%s331 + $0x94] sm:$0xf]
          %v826 = vld [vmem:[%s331 + $0x98] sm:$0xf]
          %v827 = vld [vmem:[%s331 + $0x9c] sm:$0xf]
          %v828 = vld [vmem:[%s331 + $0xa0] sm:$0xf]
          %v829 = vld [vmem:[%s331 + $0xa4] sm:$0xf]
          %v830 = vld [vmem:[%s331 + $0xa8] sm:$0xf]
          %v831 = vld [vmem:[%s331 + $0xac] sm:$0xf]
          %v832 = vld [vmem:[%s331 + $0xb0] sm:$0xf]
          %v833 = vld [vmem:[%s331 + $0xb4] sm:$0xf]
          %v834 = vld [vmem:[%s331 + $0xb8] sm:$0xf]
          %v835 = vld [vmem:[%s331 + $0xbc] sm:$0xf]
          %v836 = vld [vmem:[%s331 + $0xc0] sm:$0xf]
          %v837 = vld [vmem:[%s331 + $0xc4] sm:$0xf]
          %v838 = vld [vmem:[%s331 + $0xc8] sm:$0xf]
          %v839 = vld [vmem:[%s331 + $0xcc] sm:$0xf]
          %v840 = vld [vmem:[%s331 + $0xd0] sm:$0xf]
          %v841 = vld [vmem:[%s331 + $0xd4] sm:$0xf]
          %v842 = vld [vmem:[%s331 + $0xd8] sm:$0xf]
          %v843 = vld [vmem:[%s331 + $0xdc] sm:$0xf]
          %v844 = vld [vmem:[%s331 + $0xe0] sm:$0xf]
          %v845 = vld [vmem:[%s331 + $0xe4] sm:$0xf]
          %v846 = vld [vmem:[%s331 + $0xe8] sm:$0xf]
          %v847 = vld [vmem:[%s331 + $0xec] sm:$0xf]
          %v848 = vld [vmem:[%s331 + $0xf0] sm:$0xf]
          %v849 = vld [vmem:[%s331 + $0xf4] sm:$0xf]
          %v850 = vld [vmem:[%s331 + $0xf8] sm:$0xf]
          %v851 = vld [vmem:[%s331 + $0xfc] sm:$0xf]
          %v916 = vunpack.c.l.b16 %v788
          %v917 = vunpack.c.l.b16 %v789
          %v918 = vunpack.c.l.b16 %v790
          %v919 = vunpack.c.l.b16 %v791
          %v920 = vunpack.c.l.b16 %v792
          %v921 = vunpack.c.l.b16 %v793
          %v922 = vunpack.c.l.b16 %v794
          %v923 = vunpack.c.l.b16 %v795
          %v924 = vunpack.c.l.b16 %v796
          %v925 = vunpack.c.l.b16 %v797
          %v926 = vunpack.c.l.b16 %v798
          %v927 = vunpack.c.l.b16 %v799
          %v928 = vunpack.c.l.b16 %v800
          %v929 = vunpack.c.l.b16 %v801
          %v930 = vunpack.c.l.b16 %v802
          %v931 = vunpack.c.l.b16 %v803
          %v932 = vunpack.c.l.b16 %v804
          %v933 = vunpack.c.l.b16 %v805
          %v934 = vunpack.c.l.b16 %v806
          %v935 = vunpack.c.l.b16 %v807
          %v936 = vunpack.c.l.b16 %v808
          %v937 = vunpack.c.l.b16 %v809
          %v938 = vunpack.c.l.b16 %v810
          %v939 = vunpack.c.l.b16 %v811
          %v940 = vunpack.c.l.b16 %v812
          %v941 = vunpack.c.l.b16 %v813
          %v942 = vunpack.c.l.b16 %v814
          %v943 = vunpack.c.l.b16 %v815
          %v944 = vunpack.c.l.b16 %v816
          %v945 = vunpack.c.l.b16 %v817
          %v946 = vunpack.c.l.b16 %v818
          %v947 = vunpack.c.l.b16 %v819
          %v948 = vunpack.c.l.b16 %v820
          %v949 = vunpack.c.l.b16 %v821
          %v950 = vunpack.c.l.b16 %v822
          %v951 = vunpack.c.l.b16 %v823
          %v952 = vunpack.c.l.b16 %v824
          %v953 = vunpack.c.l.b16 %v825
          %v954 = vunpack.c.l.b16 %v826
          %v955 = vunpack.c.l.b16 %v827
          %v956 = vunpack.c.l.b16 %v828
          %v957 = vunpack.c.l.b16 %v829
          %v958 = vunpack.c.l.b16 %v830
          %v959 = vunpack.c.l.b16 %v831
          %v960 = vunpack.c.l.b16 %v832
          %v961 = vunpack.c.l.b16 %v833
          %v962 = vunpack.c.l.b16 %v834
          %v963 = vunpack.c.l.b16 %v835
          %v964 = vunpack.c.l.b16 %v836
          %v965 = vunpack.c.l.b16 %v837
          %v966 = vunpack.c.l.b16 %v838
          %v967 = vunpack.c.l.b16 %v839
          %v968 = vunpack.c.l.b16 %v840
          %v969 = vunpack.c.l.b16 %v841
          %v970 = vunpack.c.l.b16 %v842
          %v971 = vunpack.c.l.b16 %v843
          %v972 = vunpack.c.l.b16 %v844
          %v973 = vunpack.c.l.b16 %v845
          %v974 = vunpack.c.l.b16 %v846
          %v975 = vunpack.c.l.b16 %v847
          %v976 = vunpack.c.l.b16 %v848
          %v977 = vunpack.c.l.b16 %v849
          %v978 = vunpack.c.l.b16 %v850
          %v979 = vunpack.c.l.b16 %v851
          %v980 = vpack.c.b16 %v917, %v916
          %v981 = vpack.c.b16 %v919, %v918
          %v982 = vpack.c.b16 %v921, %v920
          %v983 = vpack.c.b16 %v923, %v922
          %v984 = vpack.c.b16 %v925, %v924
          %v985 = vpack.c.b16 %v927, %v926
          %v986 = vpack.c.b16 %v929, %v928
          %v987 = vpack.c.b16 %v931, %v930
          %v988 = vpack.c.b16 %v933, %v932
          %v989 = vpack.c.b16 %v935, %v934
          %v990 = vpack.c.b16 %v937, %v936
          %v991 = vpack.c.b16 %v939, %v938
          %v992 = vpack.c.b16 %v941, %v940
          %v993 = vpack.c.b16 %v943, %v942
          %v994 = vpack.c.b16 %v945, %v944
          %v995 = vpack.c.b16 %v947, %v946
          %v996 = vpack.c.b16 %v949, %v948
          %v997 = vpack.c.b16 %v951, %v950
          %v998 = vpack.c.b16 %v953, %v952
          %v999 = vpack.c.b16 %v955, %v954
          %v1000 = vpack.c.b16 %v957, %v956
          %v1001 = vpack.c.b16 %v959, %v958
          %v1002 = vpack.c.b16 %v961, %v960
          %v1003 = vpack.c.b16 %v963, %v962
          %v1004 = vpack.c.b16 %v965, %v964
          %v1005 = vpack.c.b16 %v967, %v966
          %v1006 = vpack.c.b16 %v969, %v968
          %v1007 = vpack.c.b16 %v971, %v970
          %v1008 = vpack.c.b16 %v973, %v972
          %v1009 = vpack.c.b16 %v975, %v974
          %v1010 = vpack.c.b16 %v977, %v976
          %v1011 = vpack.c.b16 %v979, %v978
          %1044 = vmatprep.subr.bf16.mxu0 0
          %1045 = vmatpush1.bf16.msra.mxu0 %v987
          %1046 = vmatprep.subr.bf16.mxu0 0
          %1047 = vmatpush1.bf16.msra.mxu0 %v986
          %1048 = vmatprep.subr.bf16.mxu0 0
          %1049 = vmatpush1.bf16.msra.mxu0 %v985
          %1050 = vmatprep.subr.bf16.mxu0 0
          %1051 = vmatpush1.bf16.msra.mxu0 %v984
          %1052 = vmatprep.subr.bf16.mxu0 0
          %1053 = vmatpush1.bf16.msra.mxu0 %v983
          %1054 = vmatprep.subr.bf16.mxu0 0
          %1055 = vmatpush1.bf16.msra.mxu0 %v982
          %1056 = vmatprep.subr.bf16.mxu0 0
          %1057 = vmatpush1.bf16.msra.mxu0 %v981
          %1058 = vmatprep.subr.bf16.mxu0 0
          %1059 = vmatpush1.bf16.msra.mxu0 %v980
          %1060 = vmatprep.subr.bf16.mxu0 0
          %1061 = vmatpush2.bf16.msra.mxu0 %v995
          %1062 = vmatprep.subr.bf16.mxu0 0
          %1063 = vmatpush2.bf16.msra.mxu0 %v994
          %1064 = vmatprep.subr.bf16.mxu0 0
          %1065 = vmatpush2.bf16.msra.mxu0 %v993
          %1066 = vmatprep.subr.bf16.mxu0 0
          %1067 = vmatpush2.bf16.msra.mxu0 %v992
          %1068 = vmatprep.subr.bf16.mxu0 0
          %1069 = vmatpush2.bf16.msra.mxu0 %v991
          %1070 = vmatprep.subr.bf16.mxu0 0
          %1071 = vmatpush2.bf16.msra.mxu0 %v990
          %1072 = vmatprep.subr.bf16.mxu0 0
          %1073 = vmatpush2.bf16.msra.mxu0 %v989
          %1074 = vmatprep.subr.bf16.mxu0 0
          %1075 = vmatpush2.bf16.msra.mxu0 %v988
          %1076 = vmatprep.mubr.bf16.mxu0 %v785
          %1077 = vmatmul.mubr.bf16.gmra.mxu0 %v784
          %v1078 = vpop.f32.mrf.mxu0
          %v1079 = vadd.f32 0.0, %v1078
          %v1080 = vpop.f32.mrf.mxu0
          %v1081 = vpop.f32.mrf.mxu0
          %v1082 = vpop.f32.mrf.mxu0
          %1083 = vdwg.mxu0
          %1084 = vmatprep.subr.bf16.mxu0 0
          %1085 = vmatpush1.bf16.msra.mxu0 %v1003
          %1086 = vmatprep.subr.bf16.mxu0 0
          %1087 = vmatpush1.bf16.msra.mxu0 %v1002
          %1088 = vmatprep.subr.bf16.mxu0 0
          %1089 = vmatpush1.bf16.msra.mxu0 %v1001
          %1090 = vmatprep.subr.bf16.mxu0 0
          %1091 = vmatpush1.bf16.msra.mxu0 %v1000
          %1092 = vmatprep.subr.bf16.mxu0 0
          %1093 = vmatpush1.bf16.msra.mxu0 %v999
          %1094 = vmatprep.subr.bf16.mxu0 0
          %1095 = vmatpush1.bf16.msra.mxu0 %v998
          %1096 = vmatprep.subr.bf16.mxu0 0
          %1097 = vmatpush1.bf16.msra.mxu0 %v997
          %1098 = vmatprep.subr.bf16.mxu0 0
          %1099 = vmatpush1.bf16.msra.mxu0 %v996
          %1100 = vmatprep.subr.bf16.mxu0 0
          %1101 = vmatpush2.bf16.msra.mxu0 %v1011
          %1102 = vmatprep.subr.bf16.mxu0 0
          %1103 = vmatpush2.bf16.msra.mxu0 %v1010
          %1104 = vmatprep.subr.bf16.mxu0 0
          %1105 = vmatpush2.bf16.msra.mxu0 %v1009
          %1106 = vmatprep.subr.bf16.mxu0 0
          %1107 = vmatpush2.bf16.msra.mxu0 %v1008
          %1108 = vmatprep.subr.bf16.mxu0 0
          %1109 = vmatpush2.bf16.msra.mxu0 %v1007
          %1110 = vmatprep.subr.bf16.mxu0 0
          %1111 = vmatpush2.bf16.msra.mxu0 %v1006
          %1112 = vmatprep.subr.bf16.mxu0 0
          %1113 = vmatpush2.bf16.msra.mxu0 %v1005
          %1114 = vmatprep.subr.bf16.mxu0 0
          %1115 = vmatpush2.bf16.msra.mxu0 %v1004
          %1116 = vmatprep.mubr.bf16.mxu0 %v787
          %1117 = vmatmul.mubr.bf16.gmra.mxu0 %v786
          %v1118 = vpop.f32.mrf.mxu0
          %v1119 = vadd.f32 %v1079, %v1118
          %v1120 = vpop.f32.mrf.mxu0
          %v1121 = vpop.f32.mrf.mxu0
          %v1122 = vpop.f32.mrf.mxu0
          %1123 = vdwg.mxu0
          %1124 = vst [vmem:[%s370] sm:$0x3] %v1119
        $region60: #{tpu_custom_call.1} parent=35 // pred_fallthru
          _
        %s1125 = sand.u32 %s153, 1
        %s1126 = scalar_lea.sflag [#allocation5], %s1125
        %s1127 = sand.u32 %s153, 1
        %s1128 = smul.addr %s1127, 2
        %s1129 = scalar_lea.vmem [#allocation11], %s1128
        // Predicated region
        $region61: #{tpu_custom_call.1} parent=35 // pred_check
          %p1130 = pneg %p163
        $region62: #{tpu_custom_call.1} parent=35 // pred_check_branch
          %1132 = sbr.rel (%p1130) target = $region64
        $region63: #{tpu_custom_call.1} parent=35 // pred_region
          %s1134 = ssub.s32 32, 32
          %1135 = vsyncadd %s1126, %s1134
          %s1136 = smul.addr %s31, 32
          %s1137 = scalar_lea.hbm %s4, %s1136
          %s1139 = sshll.u32 %s1129, 4
          %s1140 = int_to_ptr.vmem [resolvable:$true] %s1139
          %1142 = dma.vmem_to_hbm [thread:$0]  %s1140, 32, %s1137, %s1126
        $region64: #{tpu_custom_call.1} parent=35 // pred_fallthru
          _
      $region36: #{tpu_custom_call.1} parent=5 // pred_fallthru
        _
      %p1143 = scmp.le.s32.totalorder 2, %s22
      // Predicated region
      $region65: #{tpu_custom_call.1} parent=5 // pred_check
        %p1144 = pneg %p1143
      $region66: #{tpu_custom_call.1} parent=5 // pred_check_branch
        %1146 = sbr.rel (%p1144) target = $region68
      $region67: #{tpu_custom_call.1} parent=5 // pred_region
        %s1147 = ssub.s32 %s22, 2
        // Predicated region
        $region69: #{tpu_custom_call.1} parent=67 // pred_check
          %p1148 = pneg %p169
        $region70: #{tpu_custom_call.1} parent=67 // pred_check_branch
          %1150 = sbr.rel (%p1148) target = $region72
        $region71: #{tpu_custom_call.1} parent=67 // pred_region
          %s1151 = sand.u32 %s154, 1
          %s1152 = scalar_lea.sflag [#allocation5], %s1151
          %s1153 = sand.u32 %s154, 1
          %s1154 = smul.addr %s1153, 2
          %s1155 = scalar_lea.vmem [#allocation11], %s1154
          %1156 = dma.done %s1152, 32
        $region72: #{tpu_custom_call.1} parent=67 // pred_fallthru
          _
      $region68: #{tpu_custom_call.1} parent=5 // pred_fallthru
        _
    $region6: #{tpu_custom_call.1} parent=1 // loop_footer
      %s26 = sadd.s32 1, %s22
    $region7: #{tpu_custom_call.1} parent=1 // loop_footer_branch
      %21 = sbr.rel target = $region3
    $region8: #{tpu_custom_call.1} parent=1 // loop_exit
      _
    %1157 = vsyncpa [#allocation4], 1
    %s1158 = scalar_lea.sflag [#allocation4], 1
    %1159 = vsyncpa %s1158, 1
    %1160 = vsyncpa [#allocation7], 1
    %s1161 = scalar_lea.sflag [#allocation7], 1
    %1162 = vsyncpa %s1161, 1
    %1163 = vsyncpa [#allocation10], 1
    %s1164 = scalar_lea.sflag [#allocation10], 1
    %1165 = vsyncpa %s1164, 1
    %1166 = vsyncpa [#allocation5], 1
    %s1167 = scalar_lea.sflag [#allocation5], 1
    %1168 = vsyncpa %s1167, 1

</llo_original>
